<compile_context>
chip_gen: v5e
topology: v5e:2x2
jax: 0.10.0
libtpu: 0.0.40
codegen_flags: <defaults>
</compile_context>

<pallas_src>
import math
import numpy as np
import jax
import jax.numpy as jnp
from jax.experimental import pallas as pl
from jax.experimental.pallas import tpu as pltpu

# --------------------------- synthetic module configuration ---------------------------
# irrep = (mul, l); block dim = mul * (2l+1)
IRREPS_IN1 = [(4, 0), (4, 1)]   # "4x0e + 4x1o" -> dim 16
IRREPS_IN2 = [(1, 0), (1, 1)]   # "1x0e + 1x1o" -> dim 4
IRREPS_OUT = [(4, 0), (4, 1)]   # "4x0e + 4x1o" -> dim 16
# (i_in1, i_in2, i_out, connection_mode, has_weight)
INSTRUCTIONS = [
    (0, 0, 0, "uvu", True),
    (1, 1, 0, "uvu", True),
    (1, 0, 1, "uvu", True),
    (0, 1, 1, "uvu", True),
    (1, 1, 1, "uvu", True),
]


def irreps_dim(irreps):
    return sum(m * (2 * l + 1) for m, l in irreps)


def irreps_slices(irreps):
    out, off = [], 0
    for m, l in irreps:
        d = m * (2 * l + 1)
        out.append((off, d))
        off += d
    return out


D1 = irreps_dim(IRREPS_IN1)     # 16
D2 = irreps_dim(IRREPS_IN2)     # 4
DO = irreps_dim(IRREPS_OUT)     # 16
KDIM = D1 * D2                  # 64 -- fused contraction dim (per row)
PACK = 8                        # rows packed per sublane-row (lane packing factor)
WEIGHT_NUMEL = sum(IRREPS_IN1[i1][0] * IRREPS_IN2[i2][0]
                   for i1, i2, _, _, hw in INSTRUCTIONS if hw)


def wigner_3j(l1, l2, l3):
    # Minimal real-basis Wigner-3j table for the l values used here.
    # TODO(synk): general o3.wigner_3j (arbitrary l) not implemented; only l <= 1 paths supported.
    if (l1, l2, l3) == (0, 0, 0):
        return np.ones((1, 1, 1), np.float64)
    if (l1, l2, l3) == (1, 1, 0):
        return (np.eye(3) / math.sqrt(3)).reshape(3, 3, 1)
    if (l1, l2, l3) == (1, 0, 1):
        return (np.eye(3) / math.sqrt(3)).reshape(3, 1, 3)
    if (l1, l2, l3) == (0, 1, 1):
        return (np.eye(3) / math.sqrt(3)).reshape(1, 3, 3)
    if (l1, l2, l3) == (1, 1, 1):
        eps = np.zeros((3, 3, 3))
        eps[0, 1, 2] = eps[1, 2, 0] = eps[2, 0, 1] = 1.0
        eps[0, 2, 1] = eps[2, 1, 0] = eps[1, 0, 2] = -1.0
        return eps / math.sqrt(6)
    raise NotImplementedError((l1, l2, l3))


def normalization_coeffs():
    # irrep_normalization="component", path_normalization="element", all vars = 1.0
    def num_elements(ins):
        i1, i2, _, mode, _ = ins
        return {"uvw": IRREPS_IN1[i1][0] * IRREPS_IN2[i2][0],
                "uvu": IRREPS_IN2[i2][0]}[mode]

    coeffs = []
    for ins in INSTRUCTIONS:
        i_out = ins[2]
        alpha = 2 * IRREPS_OUT[i_out][1] + 1
        x = sum(num_elements(i) for i in INSTRUCTIONS if i[2] == i_out)
        alpha = alpha / x
        coeffs.append(math.sqrt(alpha))
    return coeffs


def build_coupling(weight):
    """Fold weights + wigner 3j + normalization into C[D1, D2, DO] (host-side NumPy glue)."""
    w = np.asarray(weight, np.float64)
    s1, s2, so = (irreps_slices(IRREPS_IN1), irreps_slices(IRREPS_IN2),
                  irreps_slices(IRREPS_OUT))
    coeffs = normalization_coeffs()
    C = np.zeros((D1, D2, DO), np.float64)
    off = 0
    for ins, pw in zip(INSTRUCTIONS, coeffs):
        i1, i2, io, _, has_w = ins
        mul1, l1 = IRREPS_IN1[i1]
        mul2, l2 = IRREPS_IN2[i2]
        mulo, lo = IRREPS_OUT[io]
        d1, d2, do = 2 * l1 + 1, 2 * l2 + 1, 2 * lo + 1
        w3j = wigner_3j(l1, l2, lo)
        wblk = w[off:off + mul1 * mul2].reshape(mul1, mul2)
        off += mul1 * mul2
        for u in range(mul1):        # 'uvu': output multiplicity index == u
            for v in range(mul2):
                a = s1[i1][0] + u * d1
                b = s2[i2][0] + v * d2
                c = so[io][0] + u * do
                C[a:a + d1, b:b + d2, c:c + do] += pw * wblk[u, v] * w3j
    return C


def build_constants(weight):
    """Setup-time constants for the fused, lane-packed kernel (computed once, not per call)."""
    C = build_coupling(weight)                                   # (D1, D2, DO)
    # c2[j*D1 + i, k] = C[i, j, k]
    c2 = np.transpose(C, (1, 0, 2)).reshape(KDIM, DO)
    # xbig = x @ xexp  ->  xbig[z, j*D1 + i] = x[z, i]
    xexp = np.tile(np.eye(D1), (1, D2))                          # (D1, KDIM)
    # ybig = y @ yexp  ->  ybig[z, j*D1 + i] = y[z, j]
    yexp = np.kron(np.eye(D2), np.ones((1, D1)))                 # (D2, KDIM)
    # Lane-packed (block-diagonal) versions: 8 packed rows per sublane-row.
    xexp_blk = np.kron(np.eye(PACK), xexp)                       # (128, 512)
    yexp_blk = np.kron(np.eye(PACK), yexp)                       # (32, 512)
    c2_blk = np.kron(np.eye(PACK), c2)                           # (512, 128)
    return (jnp.asarray(xexp_blk, jnp.float32),
            jnp.asarray(yexp_blk, jnp.float32),
            jnp.asarray(c2_blk, jnp.float32))


# ------------------------------------ Pallas kernel ------------------------------------
def tp_kernel(xp_ref, yp_ref, xe_ref, ye_ref, c2_ref, o_ref):
    # xp_ref: (TBP, 128), yp_ref: (TBP, 32)
    # constants: xe (128, 512), ye (32, 512), c2 (512, 128) -- block-diagonal, resident in VMEM.
    xp = xp_ref[...].astype(jnp.float32)
    yp = yp_ref[...].astype(jnp.float32)
    # Expand both packed operands to the fused K=512 axis with two constant 0/1 matmuls,
    # multiply elementwise, then contract with the packed coupling matrix. All lane-dense.
    xbig = jnp.dot(xp, xe_ref[...], preferred_element_type=jnp.float32)   # (TBP, 512)
    ybig = jnp.dot(yp, ye_ref[...], preferred_element_type=jnp.float32)   # (TBP, 512)
    z = xbig * ybig                                                        # x_i * y_j per packed row
    out = jnp.dot(z, c2_ref[...], preferred_element_type=jnp.float32)     # (TBP, 128)
    o_ref[...] = out.astype(o_ref.dtype)


def _round_up(v, m):
    return ((v + m - 1) // m) * m


def _tile_and_vmem_defaults():
    # Packed working set ~= 10 KiB per packed row (double-buffered blocks + intermediates).
    #   v5e / v6e : 128 MiB physical VMEM -> 4096 packed rows (32768 original) ~ 40 MiB.
    #   v7x / unknown : 64 MiB physical VMEM -> 2048 packed rows (16384 original) ~ 20 MiB.
    try:
        kind = jax.devices()[0].device_kind.lower()
    except Exception:
        kind = ""
    if ("v5" in kind) or ("v6" in kind):
        return 4096, 96 * 1024 * 1024
    return 2048, 48 * 1024 * 1024


def _choose_packed_tile(npacked, tbp_max):
    """npacked is a multiple of 8. Returns a packed-row tile (multiple of 8, <= npacked)."""
    if npacked <= 128:                       # <= 1024 original rows: single step
        return min(_round_up(npacked, 8), tbp_max)
    steps = pl.cdiv(npacked, tbp_max)
    steps = max(2, steps)                    # >= 2 steps so both v7x TensorCores get work
    if steps % 2:
        steps += 1                           # even step count -> balanced across 2 TCs
    return max(8, _round_up(pl.cdiv(npacked, steps), 8))


def simple_tensor_product(x, y, constants, tbp=None):
    """out[..., k] = sum_{i,j} x[..., i] * y[..., j] * C[i, j, k]."""
    xexp_blk, yexp_blk, c2_blk = constants
    assert x.shape[-1] == D1, "Incorrect last dimension for x"
    assert y.shape[-1] == D2, "Incorrect last dimension for y"

    batch_shape = jnp.broadcast_shapes(x.shape[:-1], y.shape[:-1])
    # Only emit broadcast ops when batch shapes actually differ.
    # TODO(synk): when y has singleton batch dims, broadcast_to still materializes a full-size
    #             copy; a block-index trick in y's index_map would avoid that extra HBM pass.
    if x.shape[:-1] != batch_shape:
        x = jnp.broadcast_to(x, batch_shape + (D1,))
    if y.shape[:-1] != batch_shape:
        y = jnp.broadcast_to(y, batch_shape + (D2,))
    xb = x.reshape(-1, D1)          # contiguous reshape: no HBM copy
    yb = y.reshape(-1, D2)
    n = xb.shape[0]

    # Explicit pad to a multiple of 64 (= 8 sublanes * PACK rows) so the packing reshape is
    # exact for the tail rows and the packed row count is a multiple of 8.
    n_pad = _round_up(n, 8 * PACK)
    if n_pad != n:
        xb = jnp.pad(xb, ((0, n_pad - n), (0, 0)))
        yb = jnp.pad(yb, ((0, n_pad - n), (0, 0)))
    npacked = n_pad // PACK
    xp = xb.reshape(npacked, PACK * D1)      # (n/8, 128) -- contiguous reshape, no copy
    yp = yb.reshape(npacked, PACK * D2)      # (n/8, 32)

    tbp_max, vmem_limit = _tile_and_vmem_defaults()
    if tbp is None:
        tbp = _choose_packed_tile(npacked, tbp_max)
    else:
        tbp = max(8, min(_round_up(int(tbp), 8), npacked))
    grid = (pl.cdiv(npacked, tbp),)

    out_p = pl.pallas_call(
        tp_kernel,
        out_shape=jax.ShapeDtypeStruct((npacked, PACK * DO), x.dtype),
        grid_spec=pltpu.PrefetchScalarGridSpec(
            num_scalar_prefetch=0,
            grid=grid,
            in_specs=[
                pl.BlockSpec((tbp, PACK * D1), lambda i: (i, 0)),
                pl.BlockSpec((tbp, PACK * D2), lambda i: (i, 0)),
                # constant blocks: full arrays, constant index_map -> stay resident in VMEM
                pl.BlockSpec((PACK * D1, PACK * KDIM), lambda i: (0, 0)),
                pl.BlockSpec((PACK * D2, PACK * KDIM), lambda i: (0, 0)),
                pl.BlockSpec((PACK * KDIM, PACK * DO), lambda i: (0, 0)),
            ],
            out_specs=pl.BlockSpec((tbp, PACK * DO), lambda i: (i, 0)),
        ),
        compiler_params=pltpu.CompilerParams(
            dimension_semantics=("parallel",),
            vmem_limit_bytes=vmem_limit,
        ),
    )(xp, yp, xexp_blk, yexp_blk, c2_blk)

    out = out_p.reshape(n_pad, DO)           # contiguous unpack reshape, no copy
    if n_pad != n:
        out = out[:n]
    return out.reshape(batch_shape + (DO,))


# ----------------------------- pure-JAX reference (torch path) -----------------------------
def reference_tp(x, y, weight):
    batch_shape = jnp.broadcast_shapes(x.shape[:-1], y.shape[:-1])
    x1s = jnp.broadcast_to(x, batch_shape + (D1,)).reshape(-1, D1)
    x2s = jnp.broadcast_to(y, batch_shape + (D2,)).reshape(-1, D2)
    B = x1s.shape[0]
    s1, s2 = irreps_slices(IRREPS_IN1), irreps_slices(IRREPS_IN2)
    x1_list = [x1s[:, o:o + d].reshape(B, m, 2 * l + 1)
               for (o, d), (m, l) in zip(s1, IRREPS_IN1)]
    x2_list = [x2s[:, o:o + d].reshape(B, m, 2 * l + 1)
               for (o, d), (m, l) in zip(s2, IRREPS_IN2)]
    coeffs = normalization_coeffs()
    outputs = [jnp.zeros((B, m * (2 * l + 1)), jnp.float32) for m, l in IRREPS_OUT]
    off = 0
    for ins, pw in zip(INSTRUCTIONS, coeffs):
        i1, i2, io, _, _ = ins
        mul1, l1 = IRREPS_IN1[i1]
        mul2, l2 = IRREPS_IN2[i2]
        mulo, lo = IRREPS_OUT[io]
        w3j = jnp.asarray(wigner_3j(l1, l2, lo), jnp.float32)
        w = weight[off:off + mul1 * mul2].reshape(mul1, mul2)
        off += mul1 * mul2
        xx = jnp.einsum("zui,zvj->zuvij", x1_list[i1], x2_list[i2])
        res = jnp.einsum("uv,ijk,zuvij->zuk", w, w3j, xx) * pw
        outputs[io] = outputs[io] + res.reshape(B, mulo * (2 * lo + 1))
    return jnp.concatenate(outputs, axis=1).reshape(batch_shape + (DO,))


if __name__ == "__main__":
    key = jax.random.PRNGKey(0)
    kw, kx, ky, kx2, ky2 = jax.random.split(key, 5)
    # internal weight parameter (torch: randn(weight_numel)), deterministic here
    weight = jax.random.normal(kw, (WEIGHT_NUMEL,), dtype=jnp.float32)
    constants = build_constants(np.asarray(weight))

    # small example: batch=2, nodes=8
    x = jax.random.normal(kx, (2, 8, D1), dtype=jnp.float32)
    y = jax.random.normal(ky, (2, 8, D2), dtype=jnp.float32)
    out = jax.block_until_ready(simple_tensor_product(x, y, constants))
    ref = reference_tp(x, y, weight)
    assert out.shape == ref.shape == (2, 8, DO)
    assert jnp.allclose(out, ref, atol=5e-4, rtol=5e-4), "mismatch vs reference (test 1)"

    # ragged row count + broadcast batch dims: exercises the pad/slice and broadcast paths
    x2 = jax.random.normal(kx2, (3, 7, D1), dtype=jnp.float32)
    y2 = jax.random.normal(ky2, (1, 7, D2), dtype=jnp.float32)
    out2 = jax.block_until_ready(simple_tensor_product(x2, y2, constants))
    ref2 = reference_tp(x2, y2, weight)
    assert out2.shape == ref2.shape == (3, 7, DO)
    assert jnp.allclose(out2, ref2, atol=5e-4, rtol=5e-4), "mismatch vs reference (test 2)"

    print("KERNEL_OK")
</pallas_src>

<mosaic_0001>
module attributes {stable_mosaic.version = 11 : i64} {
  func.func @tp_kernel(%arg0: i32, %arg1: memref<8x128xf32, #tpu.memory_space<vmem>>, %arg2: memref<8x32xf32, #tpu.memory_space<vmem>>, %arg3: memref<128x512xf32, #tpu.memory_space<vmem>>, %arg4: memref<32x512xf32, #tpu.memory_space<vmem>>, %arg5: memref<512x128xf32, #tpu.memory_space<vmem>>, %arg6: memref<8x128xf32, #tpu.memory_space<vmem>>) attributes {dimension_semantics = [#tpu.dimension_semantics<parallel>], iteration_bounds = array<i64: 1>, scalar_prefetch = 0 : i64, scratch_operands = 0 : i64, tpu.core_type = #tpu.core_type<tc>, window_params = [{transform_indices = @transform_0, window_bounds = array<i64: 8, 128>}, {transform_indices = @transform_1, window_bounds = array<i64: 8, 32>}, {pipeline_mode = #tpu.pipeline_mode<synchronous>, transform_indices = @transform_2, window_bounds = array<i64: 128, 512>}, {pipeline_mode = #tpu.pipeline_mode<synchronous>, transform_indices = @transform_3, window_bounds = array<i64: 32, 512>}, {pipeline_mode = #tpu.pipeline_mode<synchronous>, transform_indices = @transform_4, window_bounds = array<i64: 512, 128>}, {transform_indices = @transform_5, window_bounds = array<i64: 8, 128>}]} {
    %c0 = arith.constant 0 : index
    %c0_0 = arith.constant 0 : index
    %0 = vector.load %arg1[%c0, %c0_0] : memref<8x128xf32, #tpu.memory_space<vmem>>, vector<8x128xf32>
    %c0_1 = arith.constant 0 : index
    %c0_2 = arith.constant 0 : index
    %1 = vector.load %arg2[%c0_1, %c0_2] : memref<8x32xf32, #tpu.memory_space<vmem>>, vector<8x32xf32>
    %c0_3 = arith.constant 0 : index
    %c0_4 = arith.constant 0 : index
    %2 = vector.load %arg3[%c0_3, %c0_4] : memref<128x512xf32, #tpu.memory_space<vmem>>, vector<128x512xf32>
    %cst = arith.constant dense<0.000000e+00> : vector<8x512xf32>
    %3 = tpu.matmul %0, %2, %cst {dimension_numbers = #tpu.dot_dimension_numbers<[1], [0], [0], [1], [0, 0, 1, 1], [], []>} : vector<8x128xf32>, vector<128x512xf32>, vector<8x512xf32> -> vector<8x512xf32>
    %c0_5 = arith.constant 0 : index
    %c0_6 = arith.constant 0 : index
    %4 = vector.load %arg4[%c0_5, %c0_6] : memref<32x512xf32, #tpu.memory_space<vmem>>, vector<32x512xf32>
    %cst_7 = arith.constant dense<0.000000e+00> : vector<8x512xf32>
    %5 = tpu.matmul %1, %4, %cst_7 {dimension_numbers = #tpu.dot_dimension_numbers<[1], [0], [0], [1], [0, 0, 1, 1], [], []>} : vector<8x32xf32>, vector<32x512xf32>, vector<8x512xf32> -> vector<8x512xf32>
    %6 = arith.mulf %3, %5 : vector<8x512xf32>
    %c0_8 = arith.constant 0 : index
    %c0_9 = arith.constant 0 : index
    %7 = vector.load %arg5[%c0_8, %c0_9] : memref<512x128xf32, #tpu.memory_space<vmem>>, vector<512x128xf32>
    %cst_10 = arith.constant dense<0.000000e+00> : vector<8x128xf32>
    %8 = tpu.matmul %6, %7, %cst_10 {dimension_numbers = #tpu.dot_dimension_numbers<[1], [0], [0], [1], [0, 0, 1, 1], [], []>} : vector<8x512xf32>, vector<512x128xf32>, vector<8x128xf32> -> vector<8x128xf32>
    %c0_11 = arith.constant 0 : index
    %c0_12 = arith.constant 0 : index
    %9 = vector.load %arg6[%c0_11, %c0_12] : memref<8x128xf32, #tpu.memory_space<vmem>>, vector<8x128xf32>
    tpu.vector_store %arg6[%c0_11, %c0_12], %8 {strides = array<i32>} : memref<8x128xf32, #tpu.memory_space<vmem>>, vector<8x128xf32>,
    return
  }
  func.func @transform_0(%arg0: i32) -> (i32, i32) {
    %c0_i32 = arith.constant 0 : i32
    %c0_i32_0 = arith.constant 0 : i32
    return %arg0, %c0_i32 : i32, i32
  }
  func.func @transform_1(%arg0: i32) -> (i32, i32) {
    %c0_i32 = arith.constant 0 : i32
    %c0_i32_0 = arith.constant 0 : i32
    return %arg0, %c0_i32 : i32, i32
  }
  func.func @transform_2(%arg0: i32) -> (i32, i32) {
    %c0_i32 = arith.constant 0 : i32
    %c0_i32_0 = arith.constant 0 : i32
    %c0_i32_1 = arith.constant 0 : i32
    return %c0_i32, %c0_i32_0 : i32, i32
  }
  func.func @transform_3(%arg0: i32) -> (i32, i32) {
    %c0_i32 = arith.constant 0 : i32
    %c0_i32_0 = arith.constant 0 : i32
    %c0_i32_1 = arith.constant 0 : i32
    return %c0_i32, %c0_i32_0 : i32, i32
  }
  func.func @transform_4(%arg0: i32) -> (i32, i32) {
    %c0_i32 = arith.constant 0 : i32
    %c0_i32_0 = arith.constant 0 : i32
    %c0_i32_1 = arith.constant 0 : i32
    return %c0_i32, %c0_i32_0 : i32, i32
  }
  func.func @transform_5(%arg0: i32) -> (i32, i32) {
    %c0_i32 = arith.constant 0 : i32
    %c0_i32_0 = arith.constant 0 : i32
    return %arg0, %c0_i32 : i32, i32
  }
}

</mosaic_0001>

<llo_original>
// kernel: tpu_custom_call.1
$region0: #{tpu_custom_call.1}
  #allocation0 [shape = 'u32[]', space=smem, size = 0x4, offset = 0x4, fixed_abs, tag = 'smem constant byte address 0x4 - core index']
  #allocation1 [shape = 'u32[72,128]{1,0:T(1,128)}', space=vmem, size = 0x9000, scoped, tag = 'internal scratch']
  %s0 = inlined_call_operand.hbm [shape: f32[8,128], index: 0, kind: input, shape index: {}]
  %s1 = inlined_call_operand.hbm [shape: f32[8,32], index: 1, kind: input, shape index: {}]
  %s2 = inlined_call_operand.hbm [shape: f32[128,512], index: 2, kind: input, shape index: {}]
  %s3 = inlined_call_operand.hbm [shape: f32[32,512], index: 3, kind: input, shape index: {}]
  %s4 = inlined_call_operand.hbm [shape: f32[512,128], index: 4, kind: input, shape index: {}]
  %s5 = inlined_call_operand.hbm [shape: f32[8,128], index: 5, kind: output, shape index: {}]
  %s6 = sld [smem:[#allocation0]]
  $region50: #{tpu_custom_call.1} parent=0
    _
  %s8 = ssub.s32 1, %s6
  %s9 = scalar_select 0, %s8, %s6
  $region1: #{tpu_custom_call.1} parent=0
    #allocation2 [shape = 'u8[4096]{0}', space=vmem, size = 0x1000, scoped, tag = 'input window, operand 0, single buffered']
    #allocation3 [shape = 's32[1]{0}', space=sflag, size = 0x4, scoped, tag = 'scoped memory for tpu_custom_call.1']
    #allocation4 [shape = 's32[1]{0}', space=sflag, size = 0x4, scoped, tag = 'scoped memory for tpu_custom_call.1']
    #allocation5 [shape = 'u8[4096]{0}', space=vmem, size = 0x1000, scoped, tag = 'input window, operand 1, single buffered']
    #allocation6 [shape = 's32[1]{0}', space=sflag, size = 0x4, scoped, tag = 'scoped memory for tpu_custom_call.1']
    #allocation7 [shape = 'u8[262144]{0}', space=vmem, size = 0x40000, scoped, tag = 'input window, operand 2, single buffered']
    #allocation8 [shape = 'u8[65536]{0}', space=vmem, size = 0x10000, scoped, tag = 'input window, operand 3, single buffered']
    #allocation9 [shape = 's32[1]{0}', space=sflag, size = 0x4, scoped, tag = 'scoped memory for tpu_custom_call.1']
    #allocation10 [shape = 'u8[262144]{0}', space=vmem, size = 0x40000, scoped, tag = 'input window, operand 4, single buffered']
    #allocation11 [shape = 'u8[4096]{0}', space=vmem, size = 0x1000, scoped, tag = 'output window, operand 0, single buffered']
    %10 = vsyncpa [#allocation3], 0
    %11 = vsyncpa [#allocation6], 0
    %12 = vsyncpa [#allocation9], 0
    %13 = vsyncpa [#allocation4], 0
    // Predicated region
    $region2: #{tpu_custom_call.1} parent=1 // pred_check
      _
    $region3: #{tpu_custom_call.1} parent=1 // pred_check_branch
      %15 = sbr.rel (0) target = $region5
    $region4: #{tpu_custom_call.1} parent=1 // pred_region
      %17 = vsyncadd [#allocation3], 0
      %s19 = sshll.u32 %s0, 4
      %s20 = int_to_ptr.hbm [resolvable:$true] %s19
      %s21 = sshll.u32 [#allocation2], 4
      %s22 = int_to_ptr.vmem [resolvable:$true] %s21
      %24 = dma.hbm_to_vmem [thread:$0]  %s20, 128, %s22, [#allocation3]
    $region5: #{tpu_custom_call.1} parent=1 // pred_fallthru
      _
    // Predicated region
    $region6: #{tpu_custom_call.1} parent=1 // pred_check
      _
    $region7: #{tpu_custom_call.1} parent=1 // pred_check_branch
      %26 = sbr.rel (0) target = $region9
    $region8: #{tpu_custom_call.1} parent=1 // pred_region
      %28 = vsyncadd [#allocation6], 0
      %s30 = sshll.u32 %s1, 4
      %s31 = int_to_ptr.hbm [resolvable:$true] %s30
      %s32 = sshll.u32 [#allocation5], 4
      %s33 = int_to_ptr.vmem [resolvable:$true] %s32
      %35 = dma.hbm_to_vmem [thread:$0]  %s31, 128, %s33, [#allocation6]
    $region9: #{tpu_custom_call.1} parent=1 // pred_fallthru
      _
    // Predicated region
    $region10: #{tpu_custom_call.1} parent=1 // pred_check
      _
    $region11: #{tpu_custom_call.1} parent=1 // pred_check_branch
      %37 = sbr.rel (0) target = $region13
    $region12: #{tpu_custom_call.1} parent=1 // pred_region
      %39 = vsyncadd [#allocation6], 0
      %s40 = sshll.u32 %s2, 4
      %s41 = int_to_ptr.hbm [resolvable:$true] %s40
      %s42 = sshll.u32 [#allocation7], 4
      %s43 = int_to_ptr.vmem [resolvable:$true] %s42
      %48 = dma.hbm_to_vmem [thread:$0]  %s41, 8192, %s43, [#allocation6], 512, 512, 32
    $region13: #{tpu_custom_call.1} parent=1 // pred_fallthru
      _
    // Predicated region
    $region14: #{tpu_custom_call.1} parent=1 // pred_check
      _
    $region15: #{tpu_custom_call.1} parent=1 // pred_check_branch
      %50 = sbr.rel (0) target = $region17
    $region16: #{tpu_custom_call.1} parent=1 // pred_region
      %52 = vsyncadd [#allocation9], 0
      %s53 = sshll.u32 %s3, 4
      %s54 = int_to_ptr.hbm [resolvable:$true] %s53
      %s55 = sshll.u32 [#allocation8], 4
      %s56 = int_to_ptr.vmem [resolvable:$true] %s55
      %61 = dma.hbm_to_vmem [thread:$0]  %s54, 2048, %s56, [#allocation9], 512, 512, 32
    $region17: #{tpu_custom_call.1} parent=1 // pred_fallthru
      _
    // Predicated region
    $region18: #{tpu_custom_call.1} parent=1 // pred_check
      _
    $region19: #{tpu_custom_call.1} parent=1 // pred_check_branch
      %63 = sbr.rel (0) target = $region21
    $region20: #{tpu_custom_call.1} parent=1 // pred_region
      %65 = vsyncadd [#allocation9], 0
      %s66 = sshll.u32 %s4, 4
      %s67 = int_to_ptr.hbm [resolvable:$true] %s66
      %s68 = sshll.u32 [#allocation10], 4
      %s69 = int_to_ptr.vmem [resolvable:$true] %s68
      %74 = dma.hbm_to_vmem [thread:$0]  %s67, 8192, %s69, [#allocation9], 128, 128, 8
    $region21: #{tpu_custom_call.1} parent=1 // pred_fallthru
      _
    // Predicated region
    $region22: #{tpu_custom_call.1} parent=1 // pred_check
      _
    $region23: #{tpu_custom_call.1} parent=1 // pred_check_branch
      %76 = sbr.rel (0) target = $region25
    $region24: #{tpu_custom_call.1} parent=1 // pred_region
      %78 = dma.done [#allocation3], 128
    $region25: #{tpu_custom_call.1} parent=1 // pred_fallthru
      _
    // Predicated region
    $region26: #{tpu_custom_call.1} parent=1 // pred_check
      _
    $region27: #{tpu_custom_call.1} parent=1 // pred_check_branch
      %80 = sbr.rel (0) target = $region29
    $region28: #{tpu_custom_call.1} parent=1 // pred_region
      %82 = dma.done [#allocation6], 128
    $region29: #{tpu_custom_call.1} parent=1 // pred_fallthru
      _
    // Predicated region
    $region30: #{tpu_custom_call.1} parent=1 // pred_check
      _
    $region31: #{tpu_custom_call.1} parent=1 // pred_check_branch
      %84 = sbr.rel (0) target = $region33
    $region32: #{tpu_custom_call.1} parent=1 // pred_region
      %86 = dma.done [#allocation6], 8192
    $region33: #{tpu_custom_call.1} parent=1 // pred_fallthru
      _
    // Predicated region
    $region34: #{tpu_custom_call.1} parent=1 // pred_check
      _
    $region35: #{tpu_custom_call.1} parent=1 // pred_check_branch
      %88 = sbr.rel (0) target = $region37
    $region36: #{tpu_custom_call.1} parent=1 // pred_region
      %90 = dma.done [#allocation9], 2048
    $region37: #{tpu_custom_call.1} parent=1 // pred_fallthru
      _
    // Predicated region
    $region38: #{tpu_custom_call.1} parent=1 // pred_check
      _
    $region39: #{tpu_custom_call.1} parent=1 // pred_check_branch
      %92 = sbr.rel (0) target = $region41
    $region40: #{tpu_custom_call.1} parent=1 // pred_region
      %94 = dma.done [#allocation9], 8192
    $region41: #{tpu_custom_call.1} parent=1 // pred_fallthru
      _
    %v95 = vld [vmem:[#allocation2] sm:$0xff]
    %v96 = vld [vmem:[#allocation5] sm:$0xff]
    %v97 = vld [vmem:[#allocation7] sm:$0xff]
    %v98 = vld [vmem:[#allocation7 + $0x8] sm:$0xff]
    %v99 = vld [vmem:[#allocation7 + $0x10] sm:$0xff]
    %v100 = vld [vmem:[#allocation7 + $0x18] sm:$0xff]
    %v101 = vld [vmem:[#allocation7 + $0x20] sm:$0xff]
    %v102 = vld [vmem:[#allocation7 + $0x28] sm:$0xff]
    %v103 = vld [vmem:[#allocation7 + $0x30] sm:$0xff]
    %v104 = vld [vmem:[#allocation7 + $0x38] sm:$0xff]
    %v105 = vld [vmem:[#allocation7 + $0x40] sm:$0xff]
    %v106 = vld [vmem:[#allocation7 + $0x48] sm:$0xff]
    %v107 = vld [vmem:[#allocation7 + $0x50] sm:$0xff]
    %v108 = vld [vmem:[#allocation7 + $0x58] sm:$0xff]
    %v109 = vld [vmem:[#allocation7 + $0x60] sm:$0xff]
    %v110 = vld [vmem:[#allocation7 + $0x68] sm:$0xff]
    %v111 = vld [vmem:[#allocation7 + $0x70] sm:$0xff]
    %v112 = vld [vmem:[#allocation7 + $0x78] sm:$0xff]
    %v113 = vld [vmem:[#allocation7 + $0x80] sm:$0xff]
    %v114 = vld [vmem:[#allocation7 + $0x88] sm:$0xff]
    %v115 = vld [vmem:[#allocation7 + $0x90] sm:$0xff]
    %v116 = vld [vmem:[#allocation7 + $0x98] sm:$0xff]
    %v117 = vld [vmem:[#allocation7 + $0xa0] sm:$0xff]
    %v118 = vld [vmem:[#allocation7 + $0xa8] sm:$0xff]
    %v119 = vld [vmem:[#allocation7 + $0xb0] sm:$0xff]
    %v120 = vld [vmem:[#allocation7 + $0xb8] sm:$0xff]
    %v121 = vld [vmem:[#allocation7 + $0xc0] sm:$0xff]
    %v122 = vld [vmem:[#allocation7 + $0xc8] sm:$0xff]
    %v123 = vld [vmem:[#allocation7 + $0xd0] sm:$0xff]
    %v124 = vld [vmem:[#allocation7 + $0xd8] sm:$0xff]
    %v125 = vld [vmem:[#allocation7 + $0xe0] sm:$0xff]
    %v126 = vld [vmem:[#allocation7 + $0xe8] sm:$0xff]
    %v127 = vld [vmem:[#allocation7 + $0xf0] sm:$0xff]
    %v128 = vld [vmem:[#allocation7 + $0xf8] sm:$0xff]
    %v129 = vld [vmem:[#allocation7 + $0x100] sm:$0xff]
    %v130 = vld [vmem:[#allocation7 + $0x108] sm:$0xff]
    %v131 = vld [vmem:[#allocation7 + $0x110] sm:$0xff]
    %v132 = vld [vmem:[#allocation7 + $0x118] sm:$0xff]
    %v133 = vld [vmem:[#allocation7 + $0x120] sm:$0xff]
    %v134 = vld [vmem:[#allocation7 + $0x128] sm:$0xff]
    %v135 = vld [vmem:[#allocation7 + $0x130] sm:$0xff]
    %v136 = vld [vmem:[#allocation7 + $0x138] sm:$0xff]
    %v137 = vld [vmem:[#allocation7 + $0x140] sm:$0xff]
    %v138 = vld [vmem:[#allocation7 + $0x148] sm:$0xff]
    %v139 = vld [vmem:[#allocation7 + $0x150] sm:$0xff]
    %v140 = vld [vmem:[#allocation7 + $0x158] sm:$0xff]
    %v141 = vld [vmem:[#allocation7 + $0x160] sm:$0xff]
    %v142 = vld [vmem:[#allocation7 + $0x168] sm:$0xff]
    %v143 = vld [vmem:[#allocation7 + $0x170] sm:$0xff]
    %v144 = vld [vmem:[#allocation7 + $0x178] sm:$0xff]
    %v145 = vld [vmem:[#allocation7 + $0x180] sm:$0xff]
    %v146 = vld [vmem:[#allocation7 + $0x188] sm:$0xff]
    %v147 = vld [vmem:[#allocation7 + $0x190] sm:$0xff]
    %v148 = vld [vmem:[#allocation7 + $0x198] sm:$0xff]
    %v149 = vld [vmem:[#allocation7 + $0x1a0] sm:$0xff]
    %v150 = vld [vmem:[#allocation7 + $0x1a8] sm:$0xff]
    %v151 = vld [vmem:[#allocation7 + $0x1b0] sm:$0xff]
    %v152 = vld [vmem:[#allocation7 + $0x1b8] sm:$0xff]
    %v153 = vld [vmem:[#allocation7 + $0x1c0] sm:$0xff]
    %v154 = vld [vmem:[#allocation7 + $0x1c8] sm:$0xff]
    %v155 = vld [vmem:[#allocation7 + $0x1d0] sm:$0xff]
    %v156 = vld [vmem:[#allocation7 + $0x1d8] sm:$0xff]
    %v157 = vld [vmem:[#allocation7 + $0x1e0] sm:$0xff]
    %v158 = vld [vmem:[#allocation7 + $0x1e8] sm:$0xff]
    %v159 = vld [vmem:[#allocation7 + $0x1f0] sm:$0xff]
    %v160 = vld [vmem:[#allocation7 + $0x1f8] sm:$0xff]
    %161 = vmatpush.msra.mxu0 %v157
    %162 = vmatpush.msra.mxu0 %v153
    %163 = vmatpush.msra.mxu0 %v149
    %164 = vmatpush.msra.mxu0 %v145
    %165 = vmatpush.msra.mxu0 %v141
    %166 = vmatpush.msra.mxu0 %v137
    %167 = vmatpush.msra.mxu0 %v133
    %168 = vmatpush.msra.mxu0 %v129
    %169 = vmatpush.msra.mxu0 %v125
    %170 = vmatpush.msra.mxu0 %v121
    %171 = vmatpush.msra.mxu0 %v117
    %172 = vmatpush.msra.mxu0 %v113
    %173 = vmatpush.msra.mxu0 %v109
    %174 = vmatpush.msra.mxu0 %v105
    %175 = vmatpush.msra.mxu0 %v101
    %176 = vmatpush.msra.mxu0 %v97
    %177 = vmatmul.f32.gmra.mxu0 %v95
    %v178 = vpop.f32.mrf.mxu0
    %v179 = vadd.f32 0.0, %v178
    %180 = vdwg.mxu0
    %181 = vmatpush.msra.mxu0 %v158
    %182 = vmatpush.msra.mxu0 %v154
    %183 = vmatpush.msra.mxu0 %v150
    %184 = vmatpush.msra.mxu0 %v146
    %185 = vmatpush.msra.mxu0 %v142
    %186 = vmatpush.msra.mxu0 %v138
    %187 = vmatpush.msra.mxu0 %v134
    %188 = vmatpush.msra.mxu0 %v130
    %189 = vmatpush.msra.mxu0 %v126
    %190 = vmatpush.msra.mxu0 %v122
    %191 = vmatpush.msra.mxu0 %v118
    %192 = vmatpush.msra.mxu0 %v114
    %193 = vmatpush.msra.mxu0 %v110
    %194 = vmatpush.msra.mxu0 %v106
    %195 = vmatpush.msra.mxu0 %v102
    %196 = vmatpush.msra.mxu0 %v98
    %197 = vmatmul.f32.gmra.mxu0 %v95
    %v198 = vpop.f32.mrf.mxu0
    %v199 = vadd.f32 0.0, %v198
    %200 = vdwg.mxu0
    %201 = vmatpush.msra.mxu0 %v159
    %202 = vmatpush.msra.mxu0 %v155
    %203 = vmatpush.msra.mxu0 %v151
    %204 = vmatpush.msra.mxu0 %v147
    %205 = vmatpush.msra.mxu0 %v143
    %206 = vmatpush.msra.mxu0 %v139
    %207 = vmatpush.msra.mxu0 %v135
    %208 = vmatpush.msra.mxu0 %v131
    %209 = vmatpush.msra.mxu0 %v127
    %210 = vmatpush.msra.mxu0 %v123
    %211 = vmatpush.msra.mxu0 %v119
    %212 = vmatpush.msra.mxu0 %v115
    %213 = vmatpush.msra.mxu0 %v111
    %214 = vmatpush.msra.mxu0 %v107
    %215 = vmatpush.msra.mxu0 %v103
    %216 = vmatpush.msra.mxu0 %v99
    %217 = vmatmul.f32.gmra.mxu0 %v95
    %v218 = vpop.f32.mrf.mxu0
    %v219 = vadd.f32 0.0, %v218
    %220 = vdwg.mxu0
    %221 = vmatpush.msra.mxu0 %v160
    %222 = vmatpush.msra.mxu0 %v156
    %223 = vmatpush.msra.mxu0 %v152
    %224 = vmatpush.msra.mxu0 %v148
    %225 = vmatpush.msra.mxu0 %v144
    %226 = vmatpush.msra.mxu0 %v140
    %227 = vmatpush.msra.mxu0 %v136
    %228 = vmatpush.msra.mxu0 %v132
    %229 = vmatpush.msra.mxu0 %v128
    %230 = vmatpush.msra.mxu0 %v124
    %231 = vmatpush.msra.mxu0 %v120
    %232 = vmatpush.msra.mxu0 %v116
    %233 = vmatpush.msra.mxu0 %v112
    %234 = vmatpush.msra.mxu0 %v108
    %235 = vmatpush.msra.mxu0 %v104
    %236 = vmatpush.msra.mxu0 %v100
    %237 = vmatmul.f32.gmra.mxu0 %v95
    %v238 = vpop.f32.mrf.mxu0
    %v239 = vadd.f32 0.0, %v238
    %240 = vdwg.mxu0
    %v241 = vld [vmem:[#allocation8] sm:$0xff]
    %v242 = vld [vmem:[#allocation8 + $0x8] sm:$0xff]
    %v243 = vld [vmem:[#allocation8 + $0x10] sm:$0xff]
    %v244 = vld [vmem:[#allocation8 + $0x18] sm:$0xff]
    %v245 = vld [vmem:[#allocation8 + $0x20] sm:$0xff]
    %v246 = vld [vmem:[#allocation8 + $0x28] sm:$0xff]
    %v247 = vld [vmem:[#allocation8 + $0x30] sm:$0xff]
    %v248 = vld [vmem:[#allocation8 + $0x38] sm:$0xff]
    %v249 = vld [vmem:[#allocation8 + $0x40] sm:$0xff]
    %v250 = vld [vmem:[#allocation8 + $0x48] sm:$0xff]
    %v251 = vld [vmem:[#allocation8 + $0x50] sm:$0xff]
    %v252 = vld [vmem:[#allocation8 + $0x58] sm:$0xff]
    %v253 = vld [vmem:[#allocation8 + $0x60] sm:$0xff]
    %v254 = vld [vmem:[#allocation8 + $0x68] sm:$0xff]
    %v255 = vld [vmem:[#allocation8 + $0x70] sm:$0xff]
    %v256 = vld [vmem:[#allocation8 + $0x78] sm:$0xff]
    %vm257 = vcmask 261120
    %v259 = vsel %vm257, %v96, 0
    %261 = vmatpush.msra.mxu0 0.0
    %262 = vmatpush.msra.mxu0 0.0
    %263 = vmatpush.msra.mxu0 0.0
    %264 = vmatpush.msra.mxu0 0.0
    %265 = vmatpush.msra.mxu0 0.0
    %266 = vmatpush.msra.mxu0 0.0
    %267 = vmatpush.msra.mxu0 0.0
    %268 = vmatpush.msra.mxu0 0.0
    %269 = vmatpush.msra.mxu0 0.0
    %270 = vmatpush.msra.mxu0 0.0
    %271 = vmatpush.msra.mxu0 0.0
    %272 = vmatpush.msra.mxu0 0.0
    %273 = vmatpush.msra.mxu0 %v253
    %274 = vmatpush.msra.mxu0 %v249
    %275 = vmatpush.msra.mxu0 %v245
    %276 = vmatpush.msra.mxu0 %v241
    %277 = vmatmul.f32.gmra.mxu0 %v259
    %v278 = vpop.f32.mrf.mxu0
    %v279 = vadd.f32 0.0, %v278
    %280 = vdwg.mxu0
    %281 = vmatpush.msra.mxu0 0.0
    %282 = vmatpush.msra.mxu0 0.0
    %283 = vmatpush.msra.mxu0 0.0
    %284 = vmatpush.msra.mxu0 0.0
    %285 = vmatpush.msra.mxu0 0.0
    %286 = vmatpush.msra.mxu0 0.0
    %287 = vmatpush.msra.mxu0 0.0
    %288 = vmatpush.msra.mxu0 0.0
    %289 = vmatpush.msra.mxu0 0.0
    %290 = vmatpush.msra.mxu0 0.0
    %291 = vmatpush.msra.mxu0 0.0
    %292 = vmatpush.msra.mxu0 0.0
    %293 = vmatpush.msra.mxu0 %v254
    %294 = vmatpush.msra.mxu0 %v250
    %295 = vmatpush.msra.mxu0 %v246
    %296 = vmatpush.msra.mxu0 %v242
    %297 = vmatmul.f32.gmra.mxu0 %v259
    %v298 = vpop.f32.mrf.mxu0
    %v299 = vadd.f32 0.0, %v298
    %300 = vdwg.mxu0
    %301 = vmatpush.msra.mxu0 0.0
    %302 = vmatpush.msra.mxu0 0.0
    %303 = vmatpush.msra.mxu0 0.0
    %304 = vmatpush.msra.mxu0 0.0
    %305 = vmatpush.msra.mxu0 0.0
    %306 = vmatpush.msra.mxu0 0.0
    %307 = vmatpush.msra.mxu0 0.0
    %308 = vmatpush.msra.mxu0 0.0
    %309 = vmatpush.msra.mxu0 0.0
    %310 = vmatpush.msra.mxu0 0.0
    %311 = vmatpush.msra.mxu0 0.0
    %312 = vmatpush.msra.mxu0 0.0
    %313 = vmatpush.msra.mxu0 %v255
    %314 = vmatpush.msra.mxu0 %v251
    %315 = vmatpush.msra.mxu0 %v247
    %316 = vmatpush.msra.mxu0 %v243
    %317 = vmatmul.f32.gmra.mxu0 %v259
    %v318 = vpop.f32.mrf.mxu0
    %v319 = vadd.f32 0.0, %v318
    %320 = vdwg.mxu0
    %321 = vmatpush.msra.mxu0 0.0
    %322 = vmatpush.msra.mxu0 0.0
    %323 = vmatpush.msra.mxu0 0.0
    %324 = vmatpush.msra.mxu0 0.0
    %325 = vmatpush.msra.mxu0 0.0
    %326 = vmatpush.msra.mxu0 0.0
    %327 = vmatpush.msra.mxu0 0.0
    %328 = vmatpush.msra.mxu0 0.0
    %329 = vmatpush.msra.mxu0 0.0
    %330 = vmatpush.msra.mxu0 0.0
    %331 = vmatpush.msra.mxu0 0.0
    %332 = vmatpush.msra.mxu0 0.0
    %333 = vmatpush.msra.mxu0 %v256
    %334 = vmatpush.msra.mxu0 %v252
    %335 = vmatpush.msra.mxu0 %v248
    %336 = vmatpush.msra.mxu0 %v244
    %337 = vmatmul.f32.gmra.mxu0 %v259
    %v338 = vpop.f32.mrf.mxu0
    %v339 = vadd.f32 0.0, %v338
    %340 = vdwg.mxu0
    %v341 = vmul.f32 %v179, %v279
    %v342 = vmul.f32 %v199, %v299
    %v343 = vmul.f32 %v219, %v319
    %v344 = vmul.f32 %v239, %v339
    %v345 = vld [vmem:[#allocation10] sm:$0xff]
    %v346 = vld [vmem:[#allocation10 + $0x8] sm:$0xff]
    %v347 = vld [vmem:[#allocation10 + $0x10] sm:$0xff]
    %v348 = vld [vmem:[#allocation10 + $0x18] sm:$0xff]
    %v349 = vld [vmem:[#allocation10 + $0x20] sm:$0xff]
    %v350 = vld [vmem:[#allocation10 + $0x28] sm:$0xff]
    %v351 = vld [vmem:[#allocation10 + $0x30] sm:$0xff]
    %v352 = vld [vmem:[#allocation10 + $0x38] sm:$0xff]
    %v353 = vld [vmem:[#allocation10 + $0x40] sm:$0xff]
    %v354 = vld [vmem:[#allocation10 + $0x48] sm:$0xff]
    %v355 = vld [vmem:[#allocation10 + $0x50] sm:$0xff]
    %v356 = vld [vmem:[#allocation10 + $0x58] sm:$0xff]
    %v357 = vld [vmem:[#allocation10 + $0x60] sm:$0xff]
    %v358 = vld [vmem:[#allocation10 + $0x68] sm:$0xff]
    %v359 = vld [vmem:[#allocation10 + $0x70] sm:$0xff]
    %v360 = vld [vmem:[#allocation10 + $0x78] sm:$0xff]
    %v361 = vld [vmem:[#allocation10 + $0x80] sm:$0xff]
    %v362 = vld [vmem:[#allocation10 + $0x88] sm:$0xff]
    %v363 = vld [vmem:[#allocation10 + $0x90] sm:$0xff]
    %v364 = vld [vmem:[#allocation10 + $0x98] sm:$0xff]
    %v365 = vld [vmem:[#allocation10 + $0xa0] sm:$0xff]
    %v366 = vld [vmem:[#allocation10 + $0xa8] sm:$0xff]
    %v367 = vld [vmem:[#allocation10 + $0xb0] sm:$0xff]
    %v368 = vld [vmem:[#allocation10 + $0xb8] sm:$0xff]
    %v369 = vld [vmem:[#allocation10 + $0xc0] sm:$0xff]
    %v370 = vld [vmem:[#allocation10 + $0xc8] sm:$0xff]
    %v371 = vld [vmem:[#allocation10 + $0xd0] sm:$0xff]
    %v372 = vld [vmem:[#allocation10 + $0xd8] sm:$0xff]
    %v373 = vld [vmem:[#allocation10 + $0xe0] sm:$0xff]
    %v374 = vld [vmem:[#allocation10 + $0xe8] sm:$0xff]
    %v375 = vld [vmem:[#allocation10 + $0xf0] sm:$0xff]
    %v376 = vld [vmem:[#allocation10 + $0xf8] sm:$0xff]
    %v377 = vld [vmem:[#allocation10 + $0x100] sm:$0xff]
    %v378 = vld [vmem:[#allocation10 + $0x108] sm:$0xff]
    %v379 = vld [vmem:[#allocation10 + $0x110] sm:$0xff]
    %v380 = vld [vmem:[#allocation10 + $0x118] sm:$0xff]
    %v381 = vld [vmem:[#allocation10 + $0x120] sm:$0xff]
    %v382 = vld [vmem:[#allocation10 + $0x128] sm:$0xff]
    %v383 = vld [vmem:[#allocation10 + $0x130] sm:$0xff]
    %v384 = vld [vmem:[#allocation10 + $0x138] sm:$0xff]
    %v385 = vld [vmem:[#allocation10 + $0x140] sm:$0xff]
    %v386 = vld [vmem:[#allocation10 + $0x148] sm:$0xff]
    %v387 = vld [vmem:[#allocation10 + $0x150] sm:$0xff]
    %v388 = vld [vmem:[#allocation10 + $0x158] sm:$0xff]
    %v389 = vld [vmem:[#allocation10 + $0x160] sm:$0xff]
    %v390 = vld [vmem:[#allocation10 + $0x168] sm:$0xff]
    %v391 = vld [vmem:[#allocation10 + $0x170] sm:$0xff]
    %v392 = vld [vmem:[#allocation10 + $0x178] sm:$0xff]
    %v393 = vld [vmem:[#allocation10 + $0x180] sm:$0xff]
    %v394 = vld [vmem:[#allocation10 + $0x188] sm:$0xff]
    %v395 = vld [vmem:[#allocation10 + $0x190] sm:$0xff]
    %v396 = vld [vmem:[#allocation10 + $0x198] sm:$0xff]
    %v397 = vld [vmem:[#allocation10 + $0x1a0] sm:$0xff]
    %v398 = vld [vmem:[#allocation10 + $0x1a8] sm:$0xff]
    %v399 = vld [vmem:[#allocation10 + $0x1b0] sm:$0xff]
    %v400 = vld [vmem:[#allocation10 + $0x1b8] sm:$0xff]
    %v401 = vld [vmem:[#allocation10 + $0x1c0] sm:$0xff]
    %v402 = vld [vmem:[#allocation10 + $0x1c8] sm:$0xff]
    %v403 = vld [vmem:[#allocation10 + $0x1d0] sm:$0xff]
    %v404 = vld [vmem:[#allocation10 + $0x1d8] sm:$0xff]
    %v405 = vld [vmem:[#allocation10 + $0x1e0] sm:$0xff]
    %v406 = vld [vmem:[#allocation10 + $0x1e8] sm:$0xff]
    %v407 = vld [vmem:[#allocation10 + $0x1f0] sm:$0xff]
    %v408 = vld [vmem:[#allocation10 + $0x1f8] sm:$0xff]
    %409 = vmatpush.msra.mxu0 %v360
    %410 = vmatpush.msra.mxu0 %v359
    %411 = vmatpush.msra.mxu0 %v358
    %412 = vmatpush.msra.mxu0 %v357
    %413 = vmatpush.msra.mxu0 %v356
    %414 = vmatpush.msra.mxu0 %v355
    %415 = vmatpush.msra.mxu0 %v354
    %416 = vmatpush.msra.mxu0 %v353
    %417 = vmatpush.msra.mxu0 %v352
    %418 = vmatpush.msra.mxu0 %v351
    %419 = vmatpush.msra.mxu0 %v350
    %420 = vmatpush.msra.mxu0 %v349
    %421 = vmatpush.msra.mxu0 %v348
    %422 = vmatpush.msra.mxu0 %v347
    %423 = vmatpush.msra.mxu0 %v346
    %424 = vmatpush.msra.mxu0 %v345
    %425 = vmatmul.f32.gmra.mxu0 %v341
    %v426 = vpop.f32.mrf.mxu0
    %v427 = vadd.f32 0.0, %v426
    %428 = vdwg.mxu0
    %429 = vmatpush.msra.mxu0 %v376
    %430 = vmatpush.msra.mxu0 %v375
    %431 = vmatpush.msra.mxu0 %v374
    %432 = vmatpush.msra.mxu0 %v373
    %433 = vmatpush.msra.mxu0 %v372
    %434 = vmatpush.msra.mxu0 %v371
    %435 = vmatpush.msra.mxu0 %v370
    %436 = vmatpush.msra.mxu0 %v369
    %437 = vmatpush.msra.mxu0 %v368
    %438 = vmatpush.msra.mxu0 %v367
    %439 = vmatpush.msra.mxu0 %v366
    %440 = vmatpush.msra.mxu0 %v365
    %441 = vmatpush.msra.mxu0 %v364
    %442 = vmatpush.msra.mxu0 %v363
    %443 = vmatpush.msra.mxu0 %v362
    %444 = vmatpush.msra.mxu0 %v361
    %445 = vmatmul.f32.gmra.mxu0 %v342
    %v446 = vpop.f32.mrf.mxu0
    %v447 = vadd.f32 %v427, %v446
    %448 = vdwg.mxu0
    %449 = vmatpush.msra.mxu0 %v392
    %450 = vmatpush.msra.mxu0 %v391
    %451 = vmatpush.msra.mxu0 %v390
    %452 = vmatpush.msra.mxu0 %v389
    %453 = vmatpush.msra.mxu0 %v388
    %454 = vmatpush.msra.mxu0 %v387
    %455 = vmatpush.msra.mxu0 %v386
    %456 = vmatpush.msra.mxu0 %v385
    %457 = vmatpush.msra.mxu0 %v384
    %458 = vmatpush.msra.mxu0 %v383
    %459 = vmatpush.msra.mxu0 %v382
    %460 = vmatpush.msra.mxu0 %v381
    %461 = vmatpush.msra.mxu0 %v380
    %462 = vmatpush.msra.mxu0 %v379
    %463 = vmatpush.msra.mxu0 %v378
    %464 = vmatpush.msra.mxu0 %v377
    %465 = vmatmul.f32.gmra.mxu0 %v343
    %v466 = vpop.f32.mrf.mxu0
    %v467 = vadd.f32 %v447, %v466
    %468 = vdwg.mxu0
    %469 = vmatpush.msra.mxu0 %v408
    %470 = vmatpush.msra.mxu0 %v407
    %471 = vmatpush.msra.mxu0 %v406
    %472 = vmatpush.msra.mxu0 %v405
    %473 = vmatpush.msra.mxu0 %v404
    %474 = vmatpush.msra.mxu0 %v403
    %475 = vmatpush.msra.mxu0 %v402
    %476 = vmatpush.msra.mxu0 %v401
    %477 = vmatpush.msra.mxu0 %v400
    %478 = vmatpush.msra.mxu0 %v399
    %479 = vmatpush.msra.mxu0 %v398
    %480 = vmatpush.msra.mxu0 %v397
    %481 = vmatpush.msra.mxu0 %v396
    %482 = vmatpush.msra.mxu0 %v395
    %483 = vmatpush.msra.mxu0 %v394
    %484 = vmatpush.msra.mxu0 %v393
    %485 = vmatmul.f32.gmra.mxu0 %v344
    %v486 = vpop.f32.mrf.mxu0
    %v487 = vadd.f32 %v467, %v486
    %488 = vdwg.mxu0
    %489 = vst [vmem:[#allocation11] sm:$0xff] %v487
    // Predicated region
    $region42: #{tpu_custom_call.1} parent=1 // pred_check
      _
    $region43: #{tpu_custom_call.1} parent=1 // pred_check_branch
      %491 = sbr.rel (0) target = $region45
    $region44: #{tpu_custom_call.1} parent=1 // pred_region
      %493 = vsyncadd [#allocation4], 0
      %s495 = sshll.u32 [#allocation11], 4
      %s496 = int_to_ptr.vmem [resolvable:$true] %s495
      %s497 = sshll.u32 %s5, 4
      %s498 = int_to_ptr.hbm [resolvable:$true] %s497
      %500 = dma.vmem_to_hbm [thread:$0]  %s496, 128, %s498, [#allocation4]
    $region45: #{tpu_custom_call.1} parent=1 // pred_fallthru
      _
    // Predicated region
    $region46: #{tpu_custom_call.1} parent=1 // pred_check
      _
    $region47: #{tpu_custom_call.1} parent=1 // pred_check_branch
      %502 = sbr.rel (0) target = $region49
    $region48: #{tpu_custom_call.1} parent=1 // pred_region
      %504 = dma.done [#allocation4], 128
    $region49: #{tpu_custom_call.1} parent=1 // pred_fallthru
      _
    %505 = vsyncpa [#allocation3], 1
    %506 = vsyncpa [#allocation6], 1
    %507 = vsyncpa [#allocation9], 1
    %508 = vsyncpa [#allocation4], 1

</llo_original>
